<compile_context>
chip_gen: v7x
topology: tpu7x:2x2x1
jax: 0.10.0
libtpu: 0.0.40
codegen_flags: <defaults>
</compile_context>

<pallas_src>
import functools

import jax
import jax.numpy as jnp
from jax.experimental import pallas as pl
from jax.experimental.pallas import tpu as pltpu

_EXP_CLAMP = 80.0


def _deu_kernel(x_ref, coeff_ref, o_ref):
    # x_ref: (tile_b, tile_n)  coeff_ref: (16, tile_n)  o_ref: (tile_b, tile_n)
    x = x_ref[...].astype(jnp.float32)
    co = coeff_ref[...]                  # read the (resident) coeff block once
    rp = co[0:1, :]      # alpha + beta for delta>0, else alpha
    rm = co[1:2, :]      # alpha - beta for delta>0, else alpha
    omega = co[2:3, :]   # sqrt(|delta|)/(2a)
    inv_c = co[3:4, :]   # 1/c (precomputed -> no per-element divide)
    c1 = co[4:5, :]
    c2 = co[5:6, :]
    amp = co[6:7, :]     # R   = sqrt(c1^2 + c2^2)
    phi = co[7:8, :]     # phi = atan2(c2, c1)
    over = co[8:9, :]    # (delta > 0) as f32
    under = co[9:10, :]  # (delta < 0) as f32

    # Two exps cover both exponential branches (e1 == e2 == exp(alpha*x) when not over).
    e1 = jnp.exp(jnp.minimum(rp * x, _EXP_CLAMP))
    e2 = jnp.exp(jnp.minimum(rm * x, _EXP_CLAMP))

    # delta > 0 : c1*e1 + c2*e2
    # delta == 0: (c1 + c2*x)*e1 = c1*e1 + c2*(x*e1)
    second = jnp.where(over > 0.0, e2, x * e1)
    hom_exp = c1 * e1 + c2 * second
    # delta < 0 : e1 * (c1*cos(w x) + c2*sin(w x)) == e1 * R * cos(w x - phi)
    hom_osc = (amp * e1) * jnp.cos(omega * x - phi)
    hom = jnp.where(under > 0.0, hom_osc, hom_exp)

    # Particular solution for unit-step forcing: H(x)/c.
    o_ref[...] = (hom + jnp.where(x > 0.0, inv_c, 0.0)).astype(o_ref.dtype)


@functools.partial(jax.jit, static_argnames=("block_b", "block_n"))
def deu_forward(x, coeffs, block_b=1024, block_n=512):
    """Pallas implementation of Deu.forward.

    x:      [B, N] float (f32 or bf16)
    coeffs: [N, 5] float  (per-neuron a, b, c, c1, c2)
    """
    B, N = x.shape
    f32 = jnp.float32

    # ---- O(N) per-neuron precompute (hoisted out of the kernel) ----
    a, b, c, c1, c2 = (coeffs[:, i].astype(f32) for i in range(5))
    delta = b * b - 4.0 * a * c
    two_a = 2.0 * a                      # NOTE: a == 0 or c == 0 -> inf/NaN, same as reference
    alpha = -b / two_a
    beta = jnp.sqrt(jnp.abs(delta)) / two_a
    over = (delta > 0.0).astype(f32)
    under = (delta < 0.0).astype(f32)
    amp = jnp.sqrt(c1 * c1 + c2 * c2)    # amplitude of the oscillatory branch
    phi = jnp.arctan2(c2, c1)            # phase of the oscillatory branch
    derived = jnp.stack(
        [alpha + over * beta,            # rp
         alpha - over * beta,            # rm
         beta,                           # omega
         1.0 / c,                        # inv_c
         c1, c2, amp, phi, over, under],
        axis=0)                          # [10, N]
    n_rows = derived.shape[0]

    # ---- tiling: lane-dense (multiple of 128) N, large batch tiles ----
    itemsize = jnp.dtype(x.dtype).itemsize
    sub = {4: 8, 2: 16, 1: 32}.get(itemsize, 8)        # sublane packing multiple
    tile_n = min(block_n, pl.cdiv(N, 128) * 128)
    tile_b = min(block_b, pl.cdiv(B, sub) * sub)
    grid_n = pl.cdiv(N, tile_n)
    grid_b = pl.cdiv(B, tile_b)

    # Only the tiny coefficient table is padded (zero coeffs are NaN-safe in the
    # discarded edge lanes); x / out ragged edge blocks are masked by Pallas.
    rows_pad = pl.cdiv(n_rows, 8) * 8
    n_pad = grid_n * tile_n
    derived_p = jnp.pad(derived, ((0, rows_pad - n_rows), (0, n_pad - N)))

    # VMEM budget from the actual footprint: double-buffered x + out tiles,
    # double-buffered coeff block, plus headroom for f32 body temporaries.
    io_bytes = 2 * tile_b * tile_n * itemsize * 2 + 2 * rows_pad * tile_n * 4
    temp_bytes = 8 * tile_b * tile_n * 4
    vmem_limit = max(16 * 1024 * 1024, min(io_bytes + temp_bytes, 48 * 1024 * 1024))

    return pl.pallas_call(
        _deu_kernel,
        out_shape=jax.ShapeDtypeStruct((B, N), x.dtype),
        grid_spec=pltpu.PrefetchScalarGridSpec(
            num_scalar_prefetch=0,
            # N-blocks outer, B-blocks inner -> coeff block resident across batch.
            grid=(grid_n, grid_b),
            in_specs=[
                pl.BlockSpec((tile_b, tile_n), lambda j, i: (i, j)),
                pl.BlockSpec((rows_pad, tile_n), lambda j, i: (0, j)),
            ],
            out_specs=pl.BlockSpec((tile_b, tile_n), lambda j, i: (i, j)),
        ),
        compiler_params=pltpu.CompilerParams(
            dimension_semantics=("parallel", "parallel"),
            vmem_limit_bytes=int(vmem_limit),
        ),
    )(x, derived_p)


def init_coeffs(key, n_neurons):
    """Mirror of Deu.init_coeffs: U(0,1) for a,b,c; zeros for c1,c2."""
    coeffs = jax.random.uniform(key, (n_neurons, 5), dtype=jnp.float32)
    coeffs = coeffs.at[:, 3].set(0.0)
    coeffs = coeffs.at[:, 4].set(0.0)
    return coeffs


def deu_reference(x, coeffs):
    """Pure-JAX reference using the raw (a,b,c,c1,c2) formulation."""
    a, b, c, c1, c2 = (coeffs[:, i].astype(jnp.float32)[None, :] for i in range(5))
    x = x.astype(jnp.float32)
    delta = b * b - 4.0 * a * c
    two_a = 2.0 * a
    sq_pos = jnp.sqrt(jnp.maximum(delta, 0.0))
    sq_neg = jnp.sqrt(jnp.maximum(-delta, 0.0))
    r1 = (-b + sq_pos) / two_a
    r2 = (-b - sq_pos) / two_a
    hom_over = (c1 * jnp.exp(jnp.minimum(r1 * x, _EXP_CLAMP))
                + c2 * jnp.exp(jnp.minimum(r2 * x, _EXP_CLAMP)))
    alpha = -b / two_a
    e_a = jnp.exp(jnp.minimum(alpha * x, _EXP_CLAMP))
    hom_crit = (c1 + c2 * x) * e_a
    omega = sq_neg / two_a
    hom_under = e_a * (c1 * jnp.cos(omega * x) + c2 * jnp.sin(omega * x))
    hom = jnp.where(delta > 0.0, hom_over,
                    jnp.where(delta < 0.0, hom_under, hom_crit))
    return hom + (x > 0.0).astype(jnp.float32) / c


def _assert_close(out, ref, tol, name):
    out = jnp.asarray(out, jnp.float32)
    ref = jnp.asarray(ref, jnp.float32)
    err = float(jnp.max(jnp.abs(out - ref)))
    scale = float(jnp.maximum(1.0, jnp.max(jnp.abs(ref))))
    assert err <= tol * scale, f"{name}: max abs err {err} vs scale {scale}"


if __name__ == "__main__":
    key = jax.random.PRNGKey(0)
    kx, kc = jax.random.split(key)

    B, N = 16, 32  # batch, n_neurons
    x = jax.random.normal(kx, (B, N), dtype=jnp.float32)

    # Case 1: module's own init (c1 = c2 = 0)
    coeffs = init_coeffs(kc, N)
    out = jax.block_until_ready(deu_forward(x, coeffs))
    ref = deu_reference(x, coeffs)
    assert out.shape == (B, N) and out.dtype == x.dtype
    _assert_close(out, ref, 1e-5, "init coeffs")

    # Case 2: nonzero c1/c2 to exercise all three discriminant branches
    coeffs2 = jax.random.uniform(jax.random.PRNGKey(1), (N, 5), dtype=jnp.float32)
    out2 = jax.block_until_ready(deu_forward(x, coeffs2))
    ref2 = deu_reference(x, coeffs2)
    _assert_close(out2, ref2, 1e-4, "full coeffs")

    # Case 3: ragged (non-tile-multiple) shapes exercise the no-pad masked-edge path
    B3, N3 = 13, 200
    x3 = jax.random.normal(jax.random.PRNGKey(2), (B3, N3), dtype=jnp.float32)
    coeffs3 = jax.random.uniform(jax.random.PRNGKey(3), (N3, 5), dtype=jnp.float32)
    out3 = jax.block_until_ready(deu_forward(x3, coeffs3))
    ref3 = deu_reference(x3, coeffs3)
    assert out3.shape == (B3, N3)
    _assert_close(out3, ref3, 1e-4, "ragged shapes")

    # Case 4: bf16 I/O (compute stays f32 inside the kernel)
    xb = x.astype(jnp.bfloat16)
    outb = jax.block_until_ready(deu_forward(xb, coeffs2))
    assert outb.dtype == jnp.bfloat16
    refb = deu_reference(xb, coeffs2)
    _assert_close(outb, refb, 2e-2, "bf16 io")

    print("KERNEL_OK")
</pallas_src>

<mosaic_0001>
module attributes {stable_mosaic.version = 11 : i64} {
  func.func @_deu_kernel(%arg0: i32, %arg1: i32, %arg2: memref<16x128xf32, #tpu.memory_space<vmem>>, %arg3: memref<16x128xf32, #tpu.memory_space<vmem>>, %arg4: memref<16x128xf32, #tpu.memory_space<vmem>>) attributes {dimension_semantics = [#tpu.dimension_semantics<parallel>, #tpu.dimension_semantics<parallel>], iteration_bounds = array<i64: 1, 1>, scalar_prefetch = 0 : i64, scratch_operands = 0 : i64, tpu.core_type = #tpu.core_type<tc>, window_params = [{transform_indices = @transform_0, window_bounds = array<i64: 16, 128>}, {transform_indices = @transform_1, window_bounds = array<i64: 16, 128>}, {transform_indices = @transform_2, window_bounds = array<i64: 16, 128>}]} {
    %c0 = arith.constant 0 : index
    %c0_0 = arith.constant 0 : index
    %0 = vector.load %arg2[%c0, %c0_0] : memref<16x128xf32, #tpu.memory_space<vmem>>, vector<16x128xf32>
    %c0_1 = arith.constant 0 : index
    %c0_2 = arith.constant 0 : index
    %1 = vector.load %arg3[%c0_1, %c0_2] : memref<16x128xf32, #tpu.memory_space<vmem>>, vector<16x128xf32>
    %2 = vector.extract_strided_slice %1 {offsets = [0, 0], sizes = [1, 128], strides = [1, 1]} : vector<16x128xf32> to vector<1x128xf32>
    %3 = vector.extract_strided_slice %1 {offsets = [1, 0], sizes = [1, 128], strides = [1, 1]} : vector<16x128xf32> to vector<1x128xf32>
    %4 = vector.extract_strided_slice %1 {offsets = [2, 0], sizes = [1, 128], strides = [1, 1]} : vector<16x128xf32> to vector<1x128xf32>
    %5 = vector.extract_strided_slice %1 {offsets = [3, 0], sizes = [1, 128], strides = [1, 1]} : vector<16x128xf32> to vector<1x128xf32>
    %6 = vector.extract_strided_slice %1 {offsets = [4, 0], sizes = [1, 128], strides = [1, 1]} : vector<16x128xf32> to vector<1x128xf32>
    %7 = vector.extract_strided_slice %1 {offsets = [5, 0], sizes = [1, 128], strides = [1, 1]} : vector<16x128xf32> to vector<1x128xf32>
    %8 = vector.extract_strided_slice %1 {offsets = [6, 0], sizes = [1, 128], strides = [1, 1]} : vector<16x128xf32> to vector<1x128xf32>
    %9 = vector.extract_strided_slice %1 {offsets = [7, 0], sizes = [1, 128], strides = [1, 1]} : vector<16x128xf32> to vector<1x128xf32>
    %10 = vector.extract_strided_slice %1 {offsets = [8, 0], sizes = [1, 128], strides = [1, 1]} : vector<16x128xf32> to vector<1x128xf32>
    %11 = vector.extract_strided_slice %1 {offsets = [9, 0], sizes = [1, 128], strides = [1, 1]} : vector<16x128xf32> to vector<1x128xf32>
    %12 = vector.broadcast %2 : vector<1x128xf32> to vector<16x128xf32>
    %13 = arith.mulf %12, %0 : vector<16x128xf32>
    %cst = arith.constant 8.000000e+01 : f32
    %14 = vector.broadcast %cst : f32 to vector<16x128xf32>
    %15 = arith.minimumf %13, %14 : vector<16x128xf32>
    %16 = math.exp %15 : vector<16x128xf32>
    %17 = vector.broadcast %3 : vector<1x128xf32> to vector<16x128xf32>
    %18 = arith.mulf %17, %0 : vector<16x128xf32>
    %cst_3 = arith.constant 8.000000e+01 : f32
    %19 = vector.broadcast %cst_3 : f32 to vector<16x128xf32>
    %20 = arith.minimumf %18, %19 : vector<16x128xf32>
    %21 = math.exp %20 : vector<16x128xf32>
    %cst_4 = arith.constant 0.000000e+00 : f32
    %22 = vector.broadcast %cst_4 : f32 to vector<1x128xf32>
    %23 = arith.cmpf ogt, %10, %22 : vector<1x128xf32>
    %24 = arith.mulf %0, %16 : vector<16x128xf32>
    %25 = vector.shape_cast %23 : vector<1x128xi1> to vector<1x128xi1>
    %26 = vector.broadcast %25 : vector<1x128xi1> to vector<16x128xi1>
    %27 = arith.select %26, %21, %24 : vector<16x128xi1>, vector<16x128xf32>
    %28 = vector.broadcast %6 : vector<1x128xf32> to vector<16x128xf32>
    %29 = arith.mulf %28, %16 : vector<16x128xf32>
    %30 = vector.broadcast %7 : vector<1x128xf32> to vector<16x128xf32>
    %31 = arith.mulf %30, %27 : vector<16x128xf32>
    %32 = arith.addf %29, %31 : vector<16x128xf32>
    %33 = vector.broadcast %8 : vector<1x128xf32> to vector<16x128xf32>
    %34 = arith.mulf %33, %16 : vector<16x128xf32>
    %35 = vector.broadcast %4 : vector<1x128xf32> to vector<16x128xf32>
    %36 = arith.mulf %35, %0 : vector<16x128xf32>
    %37 = vector.broadcast %9 : vector<1x128xf32> to vector<16x128xf32>
    %38 = arith.subf %36, %37 : vector<16x128xf32>
    %39 = math.cos %38 : vector<16x128xf32>
    %40 = arith.mulf %34, %39 : vector<16x128xf32>
    %cst_5 = arith.constant 0.000000e+00 : f32
    %41 = vector.broadcast %cst_5 : f32 to vector<1x128xf32>
    %42 = arith.cmpf ogt, %11, %41 : vector<1x128xf32>
    %43 = vector.shape_cast %42 : vector<1x128xi1> to vector<1x128xi1>
    %44 = vector.broadcast %43 : vector<1x128xi1> to vector<16x128xi1>
    %45 = arith.select %44, %40, %32 : vector<16x128xi1>, vector<16x128xf32>
    %cst_6 = arith.constant 0.000000e+00 : f32
    %46 = vector.broadcast %cst_6 : f32 to vector<16x128xf32>
    %47 = arith.cmpf ogt, %0, %46 : vector<16x128xf32>
    %cst_7 = arith.constant 0.000000e+00 : f32
    %48 = vector.shape_cast %5 : vector<1x128xf32> to vector<1x128xf32>
    %49 = vector.broadcast %48 : vector<1x128xf32> to vector<16x128xf32>
    %50 = vector.broadcast %cst_7 : f32 to vector<16x128xf32>
    %51 = arith.select %47, %49, %50 : vector<16x128xi1>, vector<16x128xf32>
    %52 = arith.addf %45, %51 : vector<16x128xf32>
    %c0_8 = arith.constant 0 : index
    %c0_9 = arith.constant 0 : index
    %53 = vector.load %arg4[%c0_8, %c0_9] : memref<16x128xf32, #tpu.memory_space<vmem>>, vector<16x128xf32>
    tpu.vector_store %arg4[%c0_8, %c0_9], %52 {strides = array<i32>} : memref<16x128xf32, #tpu.memory_space<vmem>>, vector<16x128xf32>,
    return
  }
  func.func @transform_0(%arg0: i32, %arg1: i32) -> (i32, i32) {
    %c0_i32 = arith.constant 0 : i32
    return %arg1, %arg0 : i32, i32
  }
  func.func @transform_1(%arg0: i32, %arg1: i32) -> (i32, i32) {
    %c0_i32 = arith.constant 0 : i32
    %c0_i32_0 = arith.constant 0 : i32
    return %c0_i32, %arg0 : i32, i32
  }
  func.func @transform_2(%arg0: i32, %arg1: i32) -> (i32, i32) {
    %c0_i32 = arith.constant 0 : i32
    return %arg1, %arg0 : i32, i32
  }
}

</mosaic_0001>

<llo_original>
// kernel: deu_forward.1
$region0: #{deu_forward.1}
  #allocation0 [shape = 'u32[]', space=smem, size = 0x4, offset = 0x4, fixed_abs, tag = 'smem constant byte address 0x4 - core index']
  #allocation1 [shape = 'u32[144,128]{1,0:T(1,128)}', space=vmem, size = 0x12000, scoped, tag = 'internal scratch']
  %s0 = inlined_call_operand.vmem [shape: f32[16,32], index: 0, kind: input, shape index: {}]
  %s1 = inlined_call_operand.vmem [shape: f32[16,128], index: 1, kind: input, shape index: {}]
  %s2 = inlined_call_operand.hbm [shape: f32[16,32], index: 2, kind: output, shape index: {}]
  %s3 = sld [smem:[#allocation0]]
  $region18: #{deu_forward.1} parent=0
    _
  %s5 = ssub.s32 1, %s3
  %s6 = scalar_select 0, %s5, %s3
  $region1: #{deu_forward.1} parent=0
    #allocation2 [shape = 'u8[8192]{0}', space=vmem, size = 0x2000, scoped, tag = 'output window, operand 0, single buffered']
    #allocation3 [shape = 's32[1]{0}', space=sflag, size = 0x4, scoped, tag = 'scoped memory for deu_forward.1']
    %7 = vsyncpa [#allocation3], 0
    // Predicated region
    $region2: #{deu_forward.1} parent=1 // pred_check
      _
    $region3: #{deu_forward.1} parent=1 // pred_check_branch
      %9 = sbr.rel (0) target = $region5
    $region4: #{deu_forward.1} parent=1 // pred_region
      _
    $region5: #{deu_forward.1} parent=1 // pred_fallthru
      _
    // Predicated region
    $region6: #{deu_forward.1} parent=1 // pred_check
      _
    $region7: #{deu_forward.1} parent=1 // pred_check_branch
      %11 = sbr.rel (0) target = $region9
    $region8: #{deu_forward.1} parent=1 // pred_region
      _
    $region9: #{deu_forward.1} parent=1 // pred_fallthru
      _
    %v12 = vld [vmem:[%s0] sm:$0xff]
    %v13 = vld [vmem:[%s0 + $0x8] sm:$0xff]
    %v14 = vld [vmem:[%s1] sm:$0xff]
    %v15 = vld [vmem:[%s1 + $0x8] sm:$0xff]
    %v16 = vlaneseq
    %v17 = vshrl.u32 %v16, 7
    %v18 = vsub.s32 0, %v17
    %v19 = vrot.slane %v14, %v18
    %v20 = vmul.f32 %v19, %v12
    %v21 = vmul.f32 %v19, %v13
    %v22 = vmin.f32 %v20, 80.0
    %v23 = vmin.f32 %v21, 80.0
    %v24 = vmul.f32 %v22, 1.442695
    %v25 = vpow.pop %v24
    %v26 = vmul.f32 %v23, 1.442695
    %v27 = vpow.pop %v26
    %v28 = vlaneseq
    %v29 = vshrl.u32 %v28, 7
    %v30 = vsub.s32 1, %v29
    %v31 = vrot.slane %v14, %v30
    %v32 = vmul.f32 %v31, %v12
    %v33 = vmul.f32 %v31, %v13
    %v34 = vmin.f32 %v32, 80.0
    %v35 = vmin.f32 %v33, 80.0
    %v36 = vmul.f32 %v34, 1.442695
    %v37 = vpow.pop %v36
    %v38 = vmul.f32 %v35, 1.442695
    %v39 = vpow.pop %v38
    %vm40 = vcmp.gt.f32.partialorder %v15, 0.0
    %v41 = vmul.f32 %v12, %v25
    %v42 = vmul.f32 %v13, %v27
    %v43 = vsel %vm40, 1, 0
    %v44 = vlaneseq
    %v45 = vshrl.u32 %v44, 7
    %v46 = vsub.s32 0, %v45
    %v47 = vrot.slane %v43, %v46
    %vm48 = vcmp.eq.s32.totalorder %v47, 1
    %v49 = vsel %vm48, %v37, %v41
    %v50 = vsel %vm48, %v39, %v42
    %v51 = vlaneseq
    %v52 = vshrl.u32 %v51, 7
    %v53 = vsub.s32 4, %v52
    %v54 = vrot.slane %v14, %v53
    %v55 = vmul.f32 %v54, %v25
    %v56 = vmul.f32 %v54, %v27
    %v57 = vlaneseq
    %v58 = vshrl.u32 %v57, 7
    %v59 = vsub.s32 5, %v58
    %v60 = vrot.slane %v14, %v59
    %v61 = vmul.f32 %v60, %v49
    %v62 = vmul.f32 %v60, %v50
    %v63 = vadd.f32 %v55, %v61
    %v64 = vadd.f32 %v56, %v62
    %v65 = vlaneseq
    %v66 = vshrl.u32 %v65, 7
    %v67 = vsub.s32 6, %v66
    %v68 = vrot.slane %v14, %v67
    %v69 = vmul.f32 %v68, %v25
    %v70 = vmul.f32 %v68, %v27
    %v71 = vlaneseq
    %v72 = vshrl.u32 %v71, 7
    %v73 = vsub.s32 2, %v72
    %v74 = vrot.slane %v14, %v73
    %v75 = vmul.f32 %v74, %v12
    %v76 = vmul.f32 %v74, %v13
    %v77 = vlaneseq
    %v78 = vshrl.u32 %v77, 7
    %v79 = vsub.s32 7, %v78
    %v80 = vrot.slane %v14, %v79
    %v81 = vsub.f32 %v75, %v80
    %v82 = vsub.f32 %v76, %v80
    %v83 = vand.u32 2147483647, %v81
    %vm84 = vcmp.le.f32.partialorder %v83, 0.7853982
    %vm85 = vcmp.lt.s32.totalorder %v81, 0
    %v86 = vand.u32 %v81, 2139095040
    %v87 = vshrl.u32 %v86, 23
    %v88 = vsub.s32 %v87, 127
    %v89 = vand.u32 2147483647, %v81
    %v90 = vand.u32 %v89, 8388607
    %v91 = vor.u32 %v90, 8388608
    %v92 = vsub.s32 0, %v91
    %v93 = vadd.s32 %v88, 1
    %vm94 = vcmp.gt.s32.totalorder %v93, 0
    %v95 = vsel %vm94, %v93, 0
    %v96 = vshrl.u32 %v95, 5
    %v97 = vand.u32 %v95, 31
    %v98 = vsub.s32 32, %v97
    %v99 = vshrl.u32 683565275, %v98
    %v100 = vshll.u32 683565275, %v97
    %v101 = vshrl.u32 2475754826, %v98
    %v102 = vor.u32 %v100, %v101
    %v103 = vshll.u32 2475754826, %v97
    %v104 = vshrl.u32 2131351028, %v98
    %v105 = vor.u32 %v103, %v104
    %v106 = vshll.u32 2131351028, %v97
    %v107 = vshrl.u32 2102212464, %v98
    %v108 = vor.u32 %v106, %v107
    %v109 = vshll.u32 2102212464, %v97
    %v110 = vshrl.u32 920167782, %v98
    %v111 = vor.u32 %v109, %v110
    %v112 = vshll.u32 920167782, %v97
    %v113 = vshrl.u32 1326507024, %v98
    %v114 = vor.u32 %v112, %v113
    %vm115 = vcmp.lt.s32.totalorder %v96, 1
    %vm116 = vcmp.lt.s32.totalorder %v96, 2
    %vm117 = vcmp.lt.s32.totalorder %v96, 3
    %vm118 = vcmp.lt.s32.totalorder %v96, 4
    %v119 = vsel %vm115, %v99, %v102
    %v120 = vsel %vm118, %v108, 2102212464
    %v121 = vsel %vm117, %v105, %v120
    %v122 = vsel %vm116, %v119, %v121
    %v123 = vsel %vm115, %v102, %v105
    %v124 = vsel %vm118, %v111, 920167782
    %v125 = vsel %vm117, %v108, %v124
    %v126 = vsel %vm116, %v123, %v125
    %v127 = vsel %vm115, %v105, %v108
    %v128 = vsel %vm118, %v114, 1326507024
    %v129 = vsel %vm117, %v111, %v128
    %v130 = vsel %vm116, %v127, %v129
    %v131 = vshll.u32 %v91, 8
    %v132 = vmul.u32.u64.compose %v131, %v130
    %v133 = vextract.low.u32 %v132
    %v134 = vextract.high.u32 %v132
    %v135 = vmul.u32.u64.compose %v131, %v126
    %v136 = vextract.low.u32 %v135
    %v137 = vextract.high.u32 %v135
    %v138 = vmul.u32 %v131, %v122
    %v139 = vadd.s32 %v134, %v136
    %vm140 = vc.u32 %v134, %v136
    %v141 = vadd.s32 %v137, 1
    %v142 = vsel %vm140, %v141, %v137
    %v143 = vadd.s32 %v138, %v142
    %v144 = vadd.s32 %v143, 536870912
    %v145 = vshrl.u32 %v144, 30
    %v146 = vshll.u32 %v145, 30
    %v147 = vsub.s32 %v143, %v146
    %vm148 = vcmp.lt.s32.totalorder %v147, 0
    %v149 = vsub.s32 0, %v147
    %v150 = vsel %vm148, %v149, %v147
    %v151 = vclz %v150
    %v152 = vsub.s32 %v151, 2
    %vm153 = vcmp.gt.s32.totalorder 0, %v152
    %v154 = vsel %vm153, 0, %v152
    %v155 = vsub.s32 32, %v154
    %v156 = vshll.u32 %v147, %v154
    %v157 = vshrl.u32 %v139, %v155
    %v158 = vor.u32 %v156, %v157
    %v159 = vsub.s32 4294967266, %v154
    %v160 = vadd.s32 %v159, 127
    %v161 = vshll.u32 %v160, 23
    %v162 = vor.u32 4788187, %v161
    %v163 = vand.u32 2147483647, %v162
    %v165 = vcvt.s32.f32 %v158
    %v166 = vmul.f32 %v165, %v163
    %v167 = vxor.u32 %v166, 2147483648
    %v168 = vsel %vm85, %v167, %v166
    %v169 = vsub.s32 4, %v145
    %v170 = vsel %vm85, %v169, %v145
    %v171 = vsel %vm84, %v81, %v168
    %v172 = vsel %vm84, 0, %v170
    %v173 = vcosq.f32.pop %v171
    %v174 = vsinq.f32.pop %v171
    %vm175 = vweird.f32 %v81
    %v176 = vand.u32 %v172, 3
    %vm177 = vcmp.lt.s32.totalorder %v176, 2
    %vm178 = vcmp.eq.s32.totalorder %v176, 0
    %v179 = vxor.u32 %v174, 2147483648
    %v180 = vsel %vm178, %v173, %v179
    %vm181 = vcmp.eq.s32.totalorder %v176, 2
    %v182 = vxor.u32 %v173, 2147483648
    %v183 = vsel %vm181, %v182, %v174
    %v184 = vsel %vm177, %v180, %v183
    %v185 = vsel %vm175, nan, %v184
    %v186 = vand.u32 2147483647, %v82
    %vm187 = vcmp.le.f32.partialorder %v186, 0.7853982
    %vm188 = vcmp.lt.s32.totalorder %v82, 0
    %v189 = vand.u32 %v82, 2139095040
    %v190 = vshrl.u32 %v189, 23
    %v191 = vsub.s32 %v190, 127
    %v192 = vand.u32 2147483647, %v82
    %v193 = vand.u32 %v192, 8388607
    %v194 = vor.u32 %v193, 8388608
    %v195 = vsub.s32 0, %v194
    %v196 = vadd.s32 %v191, 1
    %vm197 = vcmp.gt.s32.totalorder %v196, 0
    %v198 = vsel %vm197, %v196, 0
    %v199 = vshrl.u32 %v198, 5
    %v200 = vand.u32 %v198, 31
    %v201 = vsub.s32 32, %v200
    %v202 = vshrl.u32 683565275, %v201
    %v203 = vshll.u32 683565275, %v200
    %v204 = vshrl.u32 2475754826, %v201
    %v205 = vor.u32 %v203, %v204
    %v206 = vshll.u32 2475754826, %v200
    %v207 = vshrl.u32 2131351028, %v201
    %v208 = vor.u32 %v206, %v207
    %v209 = vshll.u32 2131351028, %v200
    %v210 = vshrl.u32 2102212464, %v201
    %v211 = vor.u32 %v209, %v210
    %v212 = vshll.u32 2102212464, %v200
    %v213 = vshrl.u32 920167782, %v201
    %v214 = vor.u32 %v212, %v213
    %v215 = vshll.u32 920167782, %v200
    %v216 = vshrl.u32 1326507024, %v201
    %v217 = vor.u32 %v215, %v216
    %vm218 = vcmp.lt.s32.totalorder %v199, 1
    %vm219 = vcmp.lt.s32.totalorder %v199, 2
    %vm220 = vcmp.lt.s32.totalorder %v199, 3
    %vm221 = vcmp.lt.s32.totalorder %v199, 4
    %v222 = vsel %vm218, %v202, %v205
    %v223 = vsel %vm221, %v211, 2102212464
    %v224 = vsel %vm220, %v208, %v223
    %v225 = vsel %vm219, %v222, %v224
    %v226 = vsel %vm218, %v205, %v208
    %v227 = vsel %vm221, %v214, 920167782
    %v228 = vsel %vm220, %v211, %v227
    %v229 = vsel %vm219, %v226, %v228
    %v230 = vsel %vm218, %v208, %v211
    %v231 = vsel %vm221, %v217, 1326507024
    %v232 = vsel %vm220, %v214, %v231
    %v233 = vsel %vm219, %v230, %v232
    %v234 = vshll.u32 %v194, 8
    %v235 = vmul.u32.u64.compose %v234, %v233
    %v236 = vextract.low.u32 %v235
    %v237 = vextract.high.u32 %v235
    %v238 = vmul.u32.u64.compose %v234, %v229
    %v239 = vextract.low.u32 %v238
    %v240 = vextract.high.u32 %v238
    %v241 = vmul.u32 %v234, %v225
    %v242 = vadd.s32 %v237, %v239
    %vm243 = vc.u32 %v237, %v239
    %v244 = vadd.s32 %v240, 1
    %v245 = vsel %vm243, %v244, %v240
    %v246 = vadd.s32 %v241, %v245
    %v247 = vadd.s32 %v246, 536870912
    %v248 = vshrl.u32 %v247, 30
    %v249 = vshll.u32 %v248, 30
    %v250 = vsub.s32 %v246, %v249
    %vm251 = vcmp.lt.s32.totalorder %v250, 0
    %v252 = vsub.s32 0, %v250
    %v253 = vsel %vm251, %v252, %v250
    %v254 = vclz %v253
    %v255 = vsub.s32 %v254, 2
    %vm256 = vcmp.gt.s32.totalorder 0, %v255
    %v257 = vsel %vm256, 0, %v255
    %v258 = vsub.s32 32, %v257
    %v259 = vshll.u32 %v250, %v257
    %v260 = vshrl.u32 %v242, %v258
    %v261 = vor.u32 %v259, %v260
    %v262 = vsub.s32 4294967266, %v257
    %v263 = vadd.s32 %v262, 127
    %v264 = vshll.u32 %v263, 23
    %v265 = vor.u32 4788187, %v264
    %v266 = vand.u32 2147483647, %v265
    %v268 = vcvt.s32.f32 %v261
    %v269 = vmul.f32 %v268, %v266
    %v270 = vxor.u32 %v269, 2147483648
    %v271 = vsel %vm188, %v270, %v269
    %v272 = vsub.s32 4, %v248
    %v273 = vsel %vm188, %v272, %v248
    %v274 = vsel %vm187, %v82, %v271
    %v275 = vsel %vm187, 0, %v273
    %v276 = vcosq.f32.pop %v274
    %v277 = vsinq.f32.pop %v274
    %vm278 = vweird.f32 %v82
    %v279 = vand.u32 %v275, 3
    %vm280 = vcmp.lt.s32.totalorder %v279, 2
    %vm281 = vcmp.eq.s32.totalorder %v279, 0
    %v282 = vxor.u32 %v277, 2147483648
    %v283 = vsel %vm281, %v276, %v282
    %vm284 = vcmp.eq.s32.totalorder %v279, 2
    %v285 = vxor.u32 %v276, 2147483648
    %v286 = vsel %vm284, %v285, %v277
    %v287 = vsel %vm280, %v283, %v286
    %v288 = vsel %vm278, nan, %v287
    %v289 = vmul.f32 %v69, %v185
    %v290 = vmul.f32 %v70, %v288
    %v291 = vlaneseq
    %v292 = vshrl.u32 %v291, 7
    %v293 = vsub.s32 1, %v292
    %v294 = vrot.slane %v43, %v293
    %vm295 = vcmp.eq.s32.totalorder %v294, 1
    %v296 = vsel %vm295, %v289, %v63
    %v297 = vsel %vm295, %v290, %v64
    %vm298 = vcmp.gt.f32.partialorder %v12, 0.0
    %vm299 = vcmp.gt.f32.partialorder %v13, 0.0
    %v300 = vlaneseq
    %v301 = vshrl.u32 %v300, 7
    %v302 = vsub.s32 3, %v301
    %v303 = vrot.slane %v14, %v302
    %v304 = vsel %vm298, %v303, 0.0
    %v305 = vsel %vm299, %v303, 0.0
    %v306 = vadd.f32 %v296, %v304
    %v307 = vadd.f32 %v297, %v305
    %308 = vst [vmem:[#allocation2] sm:$0xff] %v306
    %309 = vst [vmem:[#allocation2 + $0x8] sm:$0xff] %v307
    // Predicated region
    $region10: #{deu_forward.1} parent=1 // pred_check
      _
    $region11: #{deu_forward.1} parent=1 // pred_check_branch
      %311 = sbr.rel (0) target = $region13
    $region12: #{deu_forward.1} parent=1 // pred_region
      %s313 = ssub.s32 256, 256
      %314 = vsyncadd [#allocation3], %s313
      %s315 = sshll.u32 [#allocation2], 4
      %s316 = int_to_ptr.vmem [resolvable:$true] %s315
      %321 = dma.vmem_to_hbm [thread:$0]  %s316, 256, %s2, [#allocation3], 128, 128, 8
    $region13: #{deu_forward.1} parent=1 // pred_fallthru
      _
    // Predicated region
    $region14: #{deu_forward.1} parent=1 // pred_check
      _
    $region15: #{deu_forward.1} parent=1 // pred_check_branch
      %323 = sbr.rel (0) target = $region17
    $region16: #{deu_forward.1} parent=1 // pred_region
      %324 = dma.done [#allocation3], 256
    $region17: #{deu_forward.1} parent=1 // pred_fallthru
      _
    %325 = vsyncpa [#allocation3], 1

</llo_original>
